<compile_context>
chip_gen: v7x
topology: tpu7x:2x2x1
jax: 0.10.0
libtpu: 0.0.40
codegen_flags: <defaults>
</compile_context>

<pallas_src>
import functools

import jax
import jax.numpy as jnp
from jax.experimental import pallas as pl
from jax.experimental.pallas import tpu as pltpu


def _ce_kernel(logit_ref, label_ref, out_ref, *, num_points, tile_n):
    """One grid step: per-point NLL over a (C, TN) logits tile.

    logit_ref: (1, C, TN)  classes on sublanes, points on lanes
    label_ref: (1, 1, TN)  int32 class ids
    out_ref:   (1, 1, TN)  per-point NLL (0 for padded tail lanes)
    """
    n = pl.program_id(1)

    x = logit_ref[0].astype(jnp.float32)                          # (C, TN)
    lab = label_ref[0]                                             # (1, TN)

    m = jnp.max(x, axis=0, keepdims=True)                          # (1, TN)
    z = x - m                                                      # (C, TN)
    lse = jnp.log(jnp.sum(jnp.exp(z), axis=0, keepdims=True))      # (1, TN)

    cls = jax.lax.broadcasted_iota(jnp.int32, z.shape, 0)          # (C, TN)
    picked_z = jnp.sum(jnp.where(cls == lab, z, 0.0),
                       axis=0, keepdims=True)                      # (1, TN)

    # Lane mask for the (possibly partial) tail chunk: boundary blocks carry
    # unspecified logits/labels in out-of-range lanes; zero their contribution.
    lane = jax.lax.broadcasted_iota(jnp.int32, (1, tile_n), 1)     # (1, TN)
    valid = (n * tile_n + lane) < num_points

    out_ref[0] = jnp.where(valid, lse - picked_z, 0.0)


def _vmem_plan():
    """Generation-aware (tile_budget_bytes, vmem_limit_bytes).

    v7x: 64 MiB physical VMEM  -> plan ~20 MiB of tiles, scoped limit 40 MiB.
    v5e/v6e: 128 MiB physical  -> plan ~32 MiB of tiles, scoped limit 64 MiB
    (v5e's default scoped limit is only 16 MiB, so raising it is required for
    multi-MiB tiles).
    """
    phys = None
    try:
        phys = getattr(pltpu.get_tpu_info(), "vmem_capacity_bytes", None)
    except Exception:
        phys = None
    if phys is not None and phys <= (64 << 20):
        return 20 << 20, 40 << 20
    return 32 << 20, 64 << 20


def _choose_tile_n(N, C, itemsize, tile_budget_bytes):
    """Pick the point-tile size (lane width) from a VMEM budget.

    Accounts for sublane padding of small C and for: double-buffered logits
    input, ~4 live f32 (C_pad, TN) temporaries, double-buffered label and
    output rows. Returns either the full N (single chunk) or a multiple of 128
    (tail handled by lane masking in the kernel)."""
    c_pad = -(-C // 8) * 8
    per_lane = (2 * itemsize * c_pad) + (4 * 4 * c_pad) + (2 * 4 * 8) + (2 * 4 * 8)
    max_tn = max(128, (tile_budget_bytes // per_lane) // 128 * 128)
    if N <= max_tn:
        return N            # block == full point dim; no tail, no (8,128) issue
    return int(max_tn)      # multiple of 128; tail chunk lane-masked


def part_seg_loss(preds, labels, *, tile_n=None):
    """Pallas implementation of PartSegLoss.forward.

    preds:  {'seg_logit': (B, C, N) float (f32 or bf16)}
    labels: {'seg_label': (B, N) int}
    returns {'seg_loss': scalar float32}
    """
    seg_logit = preds['seg_logit']
    seg_label = labels['seg_label']

    B, C, N = seg_logit.shape
    itemsize = jnp.dtype(seg_logit.dtype).itemsize

    tile_budget, vmem_limit = _vmem_plan()
    if tile_n is None:
        tile_n = _choose_tile_n(N, C, itemsize, tile_budget)

    grid_n = pl.cdiv(N, tile_n)
    grid = (B, grid_n)

    # Reshape labels (metadata only, no transpose / extra HBM traffic).
    labels3d = seg_label.reshape(B, 1, N).astype(jnp.int32)

    kernel = functools.partial(_ce_kernel, num_points=N, tile_n=tile_n)

    nll = pl.pallas_call(
        kernel,
        out_shape=jax.ShapeDtypeStruct((B, 1, grid_n * tile_n), jnp.float32),
        grid_spec=pltpu.PrefetchScalarGridSpec(
            num_scalar_prefetch=0,
            grid=grid,
            in_specs=[
                pl.BlockSpec((1, C, tile_n), lambda b, n: (b, 0, n)),
                pl.BlockSpec((1, 1, tile_n), lambda b, n: (b, 0, n)),
            ],
            # Each grid step writes its own lane-dense output block.
            out_specs=pl.BlockSpec((1, 1, tile_n), lambda b, n: (b, 0, n)),
        ),
        compiler_params=pltpu.CompilerParams(
            dimension_semantics=("parallel", "parallel"),
            vmem_limit_bytes=int(vmem_limit)),
    )(seg_logit, labels3d)

    # Padded tail lanes are exactly 0, so a plain sum is correct.
    loss = jnp.sum(nll) / jnp.float32(B * N)
    return {'seg_loss': loss}


def _reference_loss(preds, labels):
    """Pure-JAX reference matching F.cross_entropy(seg_logit, seg_label)."""
    x = preds['seg_logit'].astype(jnp.float32)            # (B, C, N)
    y = labels['seg_label']                                # (B, N)
    logp = jax.nn.log_softmax(x, axis=1)                   # over class dim
    picked = jnp.take_along_axis(logp, y[:, None, :], axis=1)[:, 0, :]
    return -jnp.mean(picked)


if __name__ == "__main__":
    key = jax.random.PRNGKey(0)
    k1, k2 = jax.random.split(key)

    B, C, N = 2, 4, 16  # batch, num part classes, num points (small demo shapes)
    seg_logit = jax.random.normal(k1, (B, C, N), dtype=jnp.float32)
    seg_label = jax.random.randint(k2, (B, N), 0, C, dtype=jnp.int32)

    preds = {'seg_logit': seg_logit}
    labels = {'seg_label': seg_label}

    out = part_seg_loss(preds, labels)
    loss = jax.block_until_ready(out['seg_loss'])

    ref = jax.block_until_ready(_reference_loss(preds, labels))
    assert jnp.allclose(loss, ref, rtol=1e-5, atol=1e-5), (loss, ref)

    print("KERNEL_OK")
</pallas_src>

<mosaic_0001>
module attributes {stable_mosaic.version = 11 : i64} {
  func.func @_ce_kernel(%arg0: i32, %arg1: i32, %arg2: memref<1x4x16xf32, #tpu.memory_space<vmem>>, %arg3: memref<1x1x16xi32, #tpu.memory_space<vmem>>, %arg4: memref<1x1x16xf32, #tpu.memory_space<vmem>>) attributes {dimension_semantics = [#tpu.dimension_semantics<parallel>, #tpu.dimension_semantics<parallel>], iteration_bounds = array<i64: 2, 1>, scalar_prefetch = 0 : i64, scratch_operands = 0 : i64, tpu.core_type = #tpu.core_type<tc>, window_params = [{transform_indices = @transform_0, window_bounds = array<i64: 1, 4, 16>}, {transform_indices = @transform_1, window_bounds = array<i64: 1, 1, 16>}, {transform_indices = @transform_2, window_bounds = array<i64: 1, 1, 16>}]} {
    %c0 = arith.constant 0 : index
    %c0_0 = arith.constant 0 : index
    %c0_1 = arith.constant 0 : index
    %0 = vector.load %arg2[%c0, %c0_0, %c0_1] : memref<1x4x16xf32, #tpu.memory_space<vmem>>, vector<1x4x16xf32>
    %1 = vector.shape_cast %0 : vector<1x4x16xf32> to vector<4x16xf32>
    %c0_2 = arith.constant 0 : index
    %c0_3 = arith.constant 0 : index
    %c0_4 = arith.constant 0 : index
    %2 = vector.load %arg3[%c0_2, %c0_3, %c0_4] : memref<1x1x16xi32, #tpu.memory_space<vmem>>, vector<1x1x16xi32>
    %3 = vector.shape_cast %2 : vector<1x1x16xi32> to vector<1x16xi32>
    %cst = arith.constant dense<0xFF800000> : vector<16xf32>
    %4 = vector.multi_reduction <maximumf>, %1, %cst [0] : vector<4x16xf32> to vector<16xf32>
    %5 = vector.shape_cast %4 : vector<16xf32> to vector<1x16xf32>
    %6 = vector.broadcast %5 : vector<1x16xf32> to vector<4x16xf32>
    %7 = arith.subf %1, %6 : vector<4x16xf32>
    %8 = math.exp %7 : vector<4x16xf32>
    %cst_5 = arith.constant dense<0.000000e+00> : vector<16xf32>
    %9 = vector.multi_reduction <add>, %8, %cst_5 [0] : vector<4x16xf32> to vector<16xf32>
    %10 = vector.shape_cast %9 : vector<16xf32> to vector<1x16xf32>
    %11 = math.log %10 : vector<1x16xf32>
    %12 = tpu.iota {dimensions = array<i32: 0>} : vector<4x16xi32>
    %13 = vector.broadcast %3 : vector<1x16xi32> to vector<4x16xi32>
    %14 = arith.cmpi eq, %12, %13 : vector<4x16xi32>
    %cst_6 = arith.constant 0.000000e+00 : f32
    %15 = vector.broadcast %cst_6 : f32 to vector<4x16xf32>
    %16 = arith.select %14, %7, %15 : vector<4x16xi1>, vector<4x16xf32>
    %cst_7 = arith.constant dense<0.000000e+00> : vector<16xf32>
    %17 = vector.multi_reduction <add>, %16, %cst_7 [0] : vector<4x16xf32> to vector<16xf32>
    %18 = vector.shape_cast %17 : vector<16xf32> to vector<1x16xf32>
    %19 = tpu.iota {dimensions = array<i32: 1>} : vector<1x16xi32>
    %c16_i32 = arith.constant 16 : i32
    %20 = arith.muli %arg1, %c16_i32 : i32
    %21 = vector.broadcast %20 : i32 to vector<1x16xi32>
    %22 = arith.addi %21, %19 : vector<1x16xi32>
    %c16_i32_8 = arith.constant 16 : i32
    %23 = vector.broadcast %c16_i32_8 : i32 to vector<1x16xi32>
    %24 = arith.cmpi slt, %22, %23 : vector<1x16xi32>
    %25 = arith.subf %11, %18 : vector<1x16xf32>
    %cst_9 = arith.constant 0.000000e+00 : f32
    %26 = vector.broadcast %cst_9 : f32 to vector<1x16xf32>
    %27 = arith.select %24, %25, %26 : vector<1x16xi1>, vector<1x16xf32>
    %c0_10 = arith.constant 0 : index
    %c0_11 = arith.constant 0 : index
    %c0_12 = arith.constant 0 : index
    %28 = vector.load %arg4[%c0_10, %c0_11, %c0_12] : memref<1x1x16xf32, #tpu.memory_space<vmem>>, vector<1x1x16xf32>
    %29 = vector.shape_cast %28 : vector<1x1x16xf32> to vector<1x16xf32>
    %30 = vector.shape_cast %27 : vector<1x16xf32> to vector<1x1x16xf32>
    tpu.vector_store %arg4[%c0_10, %c0_11, %c0_12], %30 {strides = array<i32>} : memref<1x1x16xf32, #tpu.memory_space<vmem>>, vector<1x1x16xf32>,
    return
  }
  func.func @transform_0(%arg0: i32, %arg1: i32) -> (i32, i32, i32) {
    %c0_i32 = arith.constant 0 : i32
    %c0_i32_0 = arith.constant 0 : i32
    return %arg0, %c0_i32, %arg1 : i32, i32, i32
  }
  func.func @transform_1(%arg0: i32, %arg1: i32) -> (i32, i32, i32) {
    %c0_i32 = arith.constant 0 : i32
    %c0_i32_0 = arith.constant 0 : i32
    return %arg0, %c0_i32, %arg1 : i32, i32, i32
  }
  func.func @transform_2(%arg0: i32, %arg1: i32) -> (i32, i32, i32) {
    %c0_i32 = arith.constant 0 : i32
    %c0_i32_0 = arith.constant 0 : i32
    return %arg0, %c0_i32, %arg1 : i32, i32, i32
  }
}

</mosaic_0001>

<llo_original>
// kernel: tpu_custom_call.1
$region0: #{tpu_custom_call.1}
  #allocation0 [shape = 'u32[]', space=smem, size = 0x4, offset = 0x4, fixed_abs, tag = 'smem constant byte address 0x4 - core index']
  #allocation1 [shape = 'u32[144,128]{1,0:T(1,128)}', space=vmem, size = 0x12000, scoped, tag = 'internal scratch']
  %s0 = inlined_call_operand.hbm [shape: f32[2,4,16], index: 0, kind: input, shape index: {}]
  %s1 = inlined_call_operand.hbm [shape: s32[2,1,16], index: 1, kind: input, shape index: {}]
  %s2 = inlined_call_operand.hbm [shape: f32[2,1,16], index: 2, kind: output, shape index: {}]
  %s3 = sld [smem:[#allocation0]]
  $region49: #{tpu_custom_call.1} parent=0
    _
  %s5 = ssub.s32 1, %s3
  %s6 = scalar_select 0, %s5, %s3
  $region1: #{tpu_custom_call.1} parent=0
    #allocation2 [shape = 'u8[4096]{0}', space=vmem, size = 0x1000, scoped, tag = 'input window, operand 0']
    #allocation3 [shape = 's32[2]{0}', space=sflag, size = 0x8, scoped, tag = 'scoped memory for tpu_custom_call.1']
    #allocation4 [shape = 's32[2]{0}', space=sflag, size = 0x8, scoped, tag = 'scoped memory for tpu_custom_call.1']
    #allocation5 [shape = 'u8[1024]{0}', space=vmem, size = 0x400, scoped, tag = 'input window, operand 1']
    #allocation6 [shape = 's32[2]{0}', space=sflag, size = 0x8, scoped, tag = 'scoped memory for tpu_custom_call.1']
    #allocation7 [shape = 'u8[1024]{0}', space=vmem, size = 0x400, scoped, tag = 'output window, operand 0']
    %7 = vsyncpa [#allocation3], 0
    %s8 = scalar_lea.sflag [#allocation3], 1
    %9 = vsyncpa %s8, 0
    %10 = vsyncpa [#allocation6], 0
    %s11 = scalar_lea.sflag [#allocation6], 1
    %12 = vsyncpa %s11, 0
    %13 = vsyncpa [#allocation4], 0
    %s14 = scalar_lea.sflag [#allocation4], 1
    %15 = vsyncpa %s14, 0
    loop: start=0, step=1, limit=4
    $region2: #{tpu_custom_call.1} parent=1 // loop_pre_header
      _
    $region3: #{tpu_custom_call.1} parent=1 // loop_header
      %s17 = sphi 0, %s21
      %p18 = scmp.ge.s32.totalorder %s17, 4
      %s24 = sphi 0, %s36
      %s25 = sphi 0, %s32
      %s26 = sphi 0, %s24
      %s27 = sphi 0, %s25
      %s28 = sphi 0, %s26
      %s29 = sphi 0, %s27
      %s41 = sphi 0, %s43
      %s44 = sphi 0, %s41
      %s45 = sphi 0, %s44
      %s61 = sphi 0, %s45
      %s69 = sphi 0, %s71
      %s72 = sphi 0, %s69
      %s73 = sphi 0, %s72
      %s89 = sphi 0, %s73
      %s97 = sphi 0, %s99
      %s100 = sphi 0, %s97
      %s101 = sphi 0, %s100
      %s117 = sphi 0, %s101
    $region4: #{tpu_custom_call.1} parent=1 // loop_header_branch
      %20 = sbr.rel (%p18) target = $region8
    $region5: #{tpu_custom_call.1} parent=1 // loop_body
      %s22 = ssub.s32 %s17, 1
      %s23 = ssub.s32 %s17, 2
      %s30 = sadd.s32 1, %s25
      %p31 = scmp.ge.s32.totalorder %s30, 1
      %s32 = scalar_select %p31, 0, %s30
      %s33 = sadd.s32 1, %s24
      %s34 = scalar_select %p31, %s33, %s24
      %p35 = scmp.ge.s32.totalorder %s34, 2
      %s36 = scalar_select %p35, 0, %s34
      %s37 = ssub.s32 %s24, %s36
      %s38 = ssub.s32 %s25, %s32
      %s39 = sor.u32 %s37, %s38
      %p40 = scmp.eq.s32.totalorder %s39, 0
      %s42 = sadd.s32 %s41, 1
      %s43 = scalar_select %p40, %s41, %s42
      %p46 = pneg %p40
      %p47 = scmp.eq.s32.totalorder %s17, 1
      %p48 = por %p46, %p47
      %p49 = scmp.ne.s32.totalorder %s41, %s44
      %p50 = scmp.eq.s32.totalorder %s17, 0
      %p51 = por %p49, %p50
      %p52 = scmp.ne.s32.totalorder %s41, %s44
      %p53 = scmp.eq.s32.totalorder %s22, 1
      %p54 = por %p52, %p53
      %p55 = scmp.ne.s32.totalorder %s44, %s45
      %p56 = scmp.eq.s32.totalorder %s22, 0
      %p57 = por %p55, %p56
      %p58 = scmp.ne.s32.totalorder %s44, %s45
      %p59 = scmp.eq.s32.totalorder %s23, 1
      %p60 = por %p58, %p59
      %p62 = scmp.ne.s32.totalorder %s45, %s61
      %p63 = scmp.eq.s32.totalorder %s23, 0
      %p64 = por %p62, %p63
      %s65 = ssub.s32 %s24, %s36
      %s66 = ssub.s32 %s25, %s32
      %s67 = sor.u32 %s65, %s66
      %p68 = scmp.eq.s32.totalorder %s67, 0
      %s70 = sadd.s32 %s69, 1
      %s71 = scalar_select %p68, %s69, %s70
      %p74 = pneg %p68
      %p75 = scmp.eq.s32.totalorder %s17, 1
      %p76 = por %p74, %p75
      %p77 = scmp.ne.s32.totalorder %s69, %s72
      %p78 = scmp.eq.s32.totalorder %s17, 0
      %p79 = por %p77, %p78
      %p80 = scmp.ne.s32.totalorder %s69, %s72
      %p81 = scmp.eq.s32.totalorder %s22, 1
      %p82 = por %p80, %p81
      %p83 = scmp.ne.s32.totalorder %s72, %s73
      %p84 = scmp.eq.s32.totalorder %s22, 0
      %p85 = por %p83, %p84
      %p86 = scmp.ne.s32.totalorder %s72, %s73
      %p87 = scmp.eq.s32.totalorder %s23, 1
      %p88 = por %p86, %p87
      %p90 = scmp.ne.s32.totalorder %s73, %s89
      %p91 = scmp.eq.s32.totalorder %s23, 0
      %p92 = por %p90, %p91
      %s93 = ssub.s32 %s24, %s36
      %s94 = ssub.s32 %s25, %s32
      %s95 = sor.u32 %s93, %s94
      %p96 = scmp.eq.s32.totalorder %s95, 0
      %s98 = sadd.s32 %s97, 1
      %s99 = scalar_select %p96, %s97, %s98
      %p102 = pneg %p96
      %p103 = scmp.eq.s32.totalorder %s17, 1
      %p104 = por %p102, %p103
      %p105 = scmp.ne.s32.totalorder %s97, %s100
      %p106 = scmp.eq.s32.totalorder %s17, 0
      %p107 = por %p105, %p106
      %p108 = scmp.ne.s32.totalorder %s97, %s100
      %p109 = scmp.eq.s32.totalorder %s22, 1
      %p110 = por %p108, %p109
      %p111 = scmp.ne.s32.totalorder %s100, %s101
      %p112 = scmp.eq.s32.totalorder %s22, 0
      %p113 = por %p111, %p112
      %p114 = scmp.ne.s32.totalorder %s100, %s101
      %p115 = scmp.eq.s32.totalorder %s23, 1
      %p116 = por %p114, %p115
      %p118 = scmp.ne.s32.totalorder %s101, %s117
      %p119 = scmp.eq.s32.totalorder %s23, 0
      %p120 = por %p118, %p119
      %p121 = scmp.le.s32.totalorder 1, %s17
      %p122 = scmp.lt.s32.totalorder %s17, 3
      %p123 = pnand %p121, %p122
      %p124 = pneg %p123
      // Predicated region
      $region9: #{tpu_custom_call.1} parent=5 // pred_check
        _
      $region10: #{tpu_custom_call.1} parent=5 // pred_check_branch
        %126 = sbr.rel (%p123) target = $region12
      $region11: #{tpu_custom_call.1} parent=5 // pred_region
        %s127 = ssub.s32 %s17, 1
      $region12: #{tpu_custom_call.1} parent=5 // pred_fallthru
        _
      %p128 = scmp.lt.s32.totalorder %s17, 2
      // Predicated region
      $region13: #{tpu_custom_call.1} parent=5 // pred_check
        %p129 = pneg %p128
      $region14: #{tpu_custom_call.1} parent=5 // pred_check_branch
        %131 = sbr.rel (%p129) target = $region16
      $region15: #{tpu_custom_call.1} parent=5 // pred_region
        // Predicated region
        $region17: #{tpu_custom_call.1} parent=15 // pred_check
          %p132 = pneg %p51
        $region18: #{tpu_custom_call.1} parent=15 // pred_check_branch
          %134 = sbr.rel (%p132) target = $region20
        $region19: #{tpu_custom_call.1} parent=15 // pred_region
          %s135 = sand.u32 %s41, 1
          %s136 = scalar_lea.sflag [#allocation3], %s135
          %s137 = sand.u32 %s41, 1
          %s138 = smul.addr %s137, 4
          %s139 = scalar_lea.vmem [#allocation2], %s138
          %s141 = ssub.s32 64, 64
          %142 = vsyncadd %s136, %s141
          %s143 = sadd.s32 %s25, %s24
          %s144 = smul.addr %s143, 64
          %s145 = scalar_lea.hbm %s0, %s144
          %s147 = sshll.u32 %s139, 4
          %s148 = int_to_ptr.vmem [resolvable:$true] %s147
          %150 = dma.hbm_to_vmem [thread:$0]  %s145, 64, %s148, %s136
        $region20: #{tpu_custom_call.1} parent=15 // pred_fallthru
          _
        // Predicated region
        $region21: #{tpu_custom_call.1} parent=15 // pred_check
          %p151 = pneg %p79
        $region22: #{tpu_custom_call.1} parent=15 // pred_check_branch
          %153 = sbr.rel (%p151) target = $region24
        $region23: #{tpu_custom_call.1} parent=15 // pred_region
          %s154 = sand.u32 %s69, 1
          %s155 = scalar_lea.sflag [#allocation6], %s154
          %s156 = sand.u32 %s69, 1
          %s157 = scalar_lea.vmem [#allocation5], %s156
          %s159 = ssub.s32 16, 16
          %160 = vsyncadd %s155, %s159
          %s161 = sadd.s32 %s25, %s24
          %s162 = smul.addr %s161, 16
          %s163 = scalar_lea.hbm %s1, %s162
          %s165 = sshll.u32 %s157, 4
          %s166 = int_to_ptr.vmem [resolvable:$true] %s165
          %168 = dma.hbm_to_vmem [thread:$0]  %s163, 16, %s166, %s155
        $region24: #{tpu_custom_call.1} parent=15 // pred_fallthru
          _
      $region16: #{tpu_custom_call.1} parent=5 // pred_fallthru
        _
      %p169 = scmp.le.s32.totalorder 1, %s17
      %p170 = scmp.lt.s32.totalorder %s17, 3
      %p171 = pnand %p169, %p170
      %p172 = pneg %p171
      // Predicated region
      $region25: #{tpu_custom_call.1} parent=5 // pred_check
        _
      $region26: #{tpu_custom_call.1} parent=5 // pred_check_branch
        %174 = sbr.rel (%p171) target = $region28
      $region27: #{tpu_custom_call.1} parent=5 // pred_region
        %s175 = ssub.s32 %s17, 1
        %s176 = sand.u32 %s44, 1
        %s177 = scalar_lea.sflag [#allocation3], %s176
        %s178 = sand.u32 %s44, 1
        %s179 = smul.addr %s178, 4
        %s180 = scalar_lea.vmem [#allocation2], %s179
        // Predicated region
        $region29: #{tpu_custom_call.1} parent=27 // pred_check
          %p181 = pneg %p57
        $region30: #{tpu_custom_call.1} parent=27 // pred_check_branch
          %183 = sbr.rel (%p181) target = $region32
        $region31: #{tpu_custom_call.1} parent=27 // pred_region
          %184 = dma.done %s177, 64
        $region32: #{tpu_custom_call.1} parent=27 // pred_fallthru
          _
        %s185 = sand.u32 %s72, 1
        %s186 = scalar_lea.sflag [#allocation6], %s185
        %s187 = sand.u32 %s72, 1
        %s188 = scalar_lea.vmem [#allocation5], %s187
        // Predicated region
        $region33: #{tpu_custom_call.1} parent=27 // pred_check
          %p189 = pneg %p85
        $region34: #{tpu_custom_call.1} parent=27 // pred_check_branch
          %191 = sbr.rel (%p189) target = $region36
        $region35: #{tpu_custom_call.1} parent=27 // pred_region
          %192 = dma.done %s186, 16
        $region36: #{tpu_custom_call.1} parent=27 // pred_fallthru
          _
        %s193 = sand.u32 %s44, 1
        %s194 = scalar_lea.sflag [#allocation3], %s193
        %s195 = sand.u32 %s44, 1
        %s196 = smul.addr %s195, 4
        %s197 = scalar_lea.vmem [#allocation2], %s196
        %p198 = pneg %p57
        %p199 = pneg %p54
        %s200 = sand.u32 %s72, 1
        %s201 = scalar_lea.sflag [#allocation6], %s200
        %s202 = sand.u32 %s72, 1
        %s203 = scalar_lea.vmem [#allocation5], %s202
        %p204 = pneg %p85
        %p205 = pneg %p82
        %p206 = pneg %p113
        %p207 = pneg %p110
        %s208 = sand.u32 %s100, 1
        %s209 = scalar_lea.sflag [#allocation4], %s208
        %s210 = sand.u32 %s100, 1
        %s211 = scalar_lea.vmem [#allocation7], %s210
        %v212 = vld [vmem:[%s180] sm:$0xf]
        %v213 = vld [vmem:[%s188] sm:$0x1]
        %vm214 = vcmask 125952
        %v215 = vsel %vm214, %v212, -inf
        %v216 = vrot.slane %v215, 4
        %v217 = vmax.f32 %v215, %v216
        %v218 = vrot.slane %v217, 2
        %v219 = vmax.f32 %v217, %v218
        %v220 = vrot.slane %v219, 1
        %v221 = vmax.f32 %v219, %v220
        %v222 = vsub.f32 %v212, %v221
        %v223 = vmul.f32 %v222, 1.442695
        %v224 = vpow.pop %v223
        %v225 = vsel %vm214, %v224, 0.0
        %v226 = vrot.slane %v225, 4
        %v227 = vadd.f32 %v225, %v226
        %v228 = vrot.slane %v227, 2
        %v229 = vadd.f32 %v227, %v228
        %v230 = vrot.slane %v229, 1
        %v231 = vadd.f32 %v229, %v230
        %v232 = vlog2.pop %v231
        %v233 = vmul.f32 %v232, 0.6931472
        %v234 = vlaneseq
        %v235 = vshrl.u32 %v234, 7
        %v236 = vlaneseq
        %v237 = vshrl.u32 %v236, 7
        %v238 = vsub.s32 0, %v237
        %v239 = vrot.slane %v213, %v238
        %vm240 = vcmp.eq.s32.totalorder %v235, %v239
        %v241 = vsel %vm240, %v222, 0.0
        %v242 = vsel %vm214, %v241, 0.0
        %v243 = vrot.slane %v242, 4
        %v244 = vadd.f32 %v242, %v243
        %v245 = vrot.slane %v244, 2
        %v246 = vadd.f32 %v244, %v245
        %v247 = vrot.slane %v246, 1
        %v248 = vadd.f32 %v246, %v247
        %v249 = vlaneseq
        %v250 = vand.u32 %v249, 127
        %s251 = smul.u32 %s27, 16
        %v252 = vstv %s251
        %v253 = vadd.s32 %v252, %v250
        %vm254 = vcmp.lt.s32.totalorder %v253, 16
        %v255 = vsub.f32 %v233, %v248
        %v256 = vsel %vm254, %v255, 0.0
        %vm257 = vcmask 122880
        %258 = vst.msk [vmem:[%s211] sm:$0x1] %vm257, %v256
        %s259 = sand.u32 %s100, 1
        %s260 = scalar_lea.sflag [#allocation4], %s259
        %s261 = sand.u32 %s100, 1
        %s262 = scalar_lea.vmem [#allocation7], %s261
        // Predicated region
        $region37: #{tpu_custom_call.1} parent=27 // pred_check
          %p263 = pneg %p110
        $region38: #{tpu_custom_call.1} parent=27 // pred_check_branch
          %265 = sbr.rel (%p263) target = $region40
        $region39: #{tpu_custom_call.1} parent=27 // pred_region
          %s267 = ssub.s32 16, 16
          %268 = vsyncadd %s260, %s267
          %s269 = sadd.s32 %s27, %s26
          %s270 = smul.addr %s269, 16
          %s271 = scalar_lea.hbm %s2, %s270
          %s273 = sshll.u32 %s262, 4
          %s274 = int_to_ptr.vmem [resolvable:$true] %s273
          %276 = dma.vmem_to_hbm [thread:$0]  %s274, 16, %s271, %s260
        $region40: #{tpu_custom_call.1} parent=27 // pred_fallthru
          _
      $region28: #{tpu_custom_call.1} parent=5 // pred_fallthru
        _
      %p277 = scmp.le.s32.totalorder 2, %s17
      // Predicated region
      $region41: #{tpu_custom_call.1} parent=5 // pred_check
        %p278 = pneg %p277
      $region42: #{tpu_custom_call.1} parent=5 // pred_check_branch
        %280 = sbr.rel (%p278) target = $region44
      $region43: #{tpu_custom_call.1} parent=5 // pred_region
        %s281 = ssub.s32 %s17, 2
        // Predicated region
        $region45: #{tpu_custom_call.1} parent=43 // pred_check
          %p282 = pneg %p116
        $region46: #{tpu_custom_call.1} parent=43 // pred_check_branch
          %284 = sbr.rel (%p282) target = $region48
        $region47: #{tpu_custom_call.1} parent=43 // pred_region
          %s285 = sand.u32 %s101, 1
          %s286 = scalar_lea.sflag [#allocation4], %s285
          %s287 = sand.u32 %s101, 1
          %s288 = scalar_lea.vmem [#allocation7], %s287
          %289 = dma.done %s286, 16
        $region48: #{tpu_custom_call.1} parent=43 // pred_fallthru
          _
      $region44: #{tpu_custom_call.1} parent=5 // pred_fallthru
        _
    $region6: #{tpu_custom_call.1} parent=1 // loop_footer
      %s21 = sadd.s32 1, %s17
    $region7: #{tpu_custom_call.1} parent=1 // loop_footer_branch
      %16 = sbr.rel target = $region3
    $region8: #{tpu_custom_call.1} parent=1 // loop_exit
      _
    %290 = vsyncpa [#allocation3], 1
    %s291 = scalar_lea.sflag [#allocation3], 1
    %292 = vsyncpa %s291, 1
    %293 = vsyncpa [#allocation6], 1
    %s294 = scalar_lea.sflag [#allocation6], 1
    %295 = vsyncpa %s294, 1
    %296 = vsyncpa [#allocation4], 1
    %s297 = scalar_lea.sflag [#allocation4], 1
    %298 = vsyncpa %s297, 1

</llo_original>
